<compile_context>
chip_gen: v5e
topology: v5e:2x2
jax: 0.10.0
libtpu: 0.0.40
codegen_flags: <defaults>
</compile_context>

<pallas_src>
import functools

import jax
import jax.numpy as jnp
import numpy as np
from jax import lax
from jax.experimental import pallas as pl
from jax.experimental.pallas import tpu as pltpu

_BN_EPS = 1e-5
_STEP_BYTES_BUDGET = 6 * 1024 * 1024      # streamed bytes per grid step (pointwise calls)
_DW_STEP_BYTES_BUDGET = 10 * 1024 * 1024  # streamed + scratch bytes per step (depthwise)
_VMEM_LIMIT = 32 * 1024 * 1024            # explicit scoped-VMEM limit (raises v5e's 16MiB)


def _sigmoid(x):
    return 1.0 / (1.0 + jnp.exp(-x))


# ----------------------------------------------------------------------------- kernels


def _expand_kernel(x_ref, w_ref, b_ref, o_ref):
    """1x1 conv (BN scale pre-folded into w) + folded bias + SiLU on one (1,TH,W,Cin) block."""
    _, th, wd, cin = x_ref.shape
    cexp = w_ref.shape[1]
    x = x_ref[0].reshape(th * wd, cin)
    y = jnp.dot(x, w_ref[...], preferred_element_type=jnp.float32) + b_ref[...]
    y = y * _sigmoid(y)
    o_ref[0] = y.reshape(th, wd, cexp).astype(o_ref.dtype)


def _dw_kernel(x_ref, w_ref, b_ref, y_ref, pool_ref, xp_ref, *, ksize, pad):
    """KxK depthwise conv (stride 1) + folded BN + SiLU on one (sample, channel-chunk).

    The zero halo is built in the VMEM scratch xp_ref (no HBM-padded copy).  Also emits
    the per-sample channel sums (pool_ref) so SE pooling needs no extra HBM pass.
    """
    _, h, w, c = x_ref.shape
    hp, wp, _ = xp_ref.shape
    if pad > 0:
        # Zero only the halo strips (cheap; the border is never overwritten below).
        xp_ref[0:pad, :, :] = jnp.zeros((pad, wp, c), jnp.float32)
        xp_ref[pad + h:hp, :, :] = jnp.zeros((hp - pad - h, wp, c), jnp.float32)
        xp_ref[:, 0:pad, :] = jnp.zeros((hp, pad, c), jnp.float32)
        xp_ref[:, pad + w:wp, :] = jnp.zeros((hp, wp - pad - w, c), jnp.float32)
    xp_ref[pad:pad + h, pad:pad + w, :] = x_ref[0].astype(jnp.float32)

    xp = xp_ref[...]
    acc = jnp.zeros((h, w, c), jnp.float32)
    for dy in range(ksize):                      # static unroll: K*K taps
        for dx in range(ksize):
            acc = acc + xp[dy:dy + h, dx:dx + w, :] * w_ref[dy * ksize + dx]
    y = acc + b_ref[...]                         # BN scale already folded into the taps
    y = y * _sigmoid(y)
    y_ref[0] = y.astype(y_ref.dtype)
    pool_ref[...] = jnp.sum(y, axis=(0, 1)).reshape(1, 1, c)


def _project_kernel(*refs, with_se, with_res):
    """project 1x1 conv (+folded BN) fused with SE scale, drop-path factor and residual.

    Ref order: [keep_ref (SMEM scalar prefetch, if with_res)], x, [se], w, b, [res], out.
    """
    refs = list(refs)
    keep_ref = refs.pop(0) if with_res else None
    x_ref = refs.pop(0)
    se_ref = refs.pop(0) if with_se else None
    w_ref = refs.pop(0)
    b_ref = refs.pop(0)
    res_ref = refs.pop(0) if with_res else None
    o_ref = refs.pop(0)

    _, th, wd, cexp = x_ref.shape
    cout = w_ref.shape[1]
    x = x_ref[0].reshape(th * wd, cexp)
    if with_se:
        x = (x.astype(jnp.float32) * se_ref[0]).astype(w_ref.dtype)
    y = jnp.dot(x, w_ref[...], preferred_element_type=jnp.float32) + b_ref[...]
    if with_res:
        keep = keep_ref[pl.program_id(0)]        # per-sample drop-path factor from SMEM
        y = y * keep + res_ref[0].reshape(th * wd, cout).astype(jnp.float32)
    o_ref[0] = y.reshape(th, wd, cout).astype(o_ref.dtype)


# ----------------------------------------------------------------------------- wrappers


def _pick_h_tile(h, bytes_per_row, budget_bytes):
    """Largest divisor of h whose strip fits the per-step byte budget (worst case: 1 row)."""
    divs = [d for d in range(1, h + 1) if h % d == 0]
    fit = [d for d in divs if d * bytes_per_row <= budget_bytes]
    return max(fit) if fit else 1


def _pick_channel_tile(c, bytes_per_channel, budget_bytes):
    """Full C, or the largest multiple-of-128 divisor of C fitting the per-step budget."""
    cands = [c] + [d for d in range(128, c, 128) if c % d == 0]
    fit = [d for d in cands if d * bytes_per_channel <= budget_bytes]
    if fit:
        return max(fit)
    chunks = [d for d in cands if d % 128 == 0]
    return min(chunks) if chunks else c


def _fold_bn(conv_b, gamma, beta, mean, var):
    """Folded inference BN: y = conv_out * scale + bias (scale later folded into weights)."""
    scale = gamma / jnp.sqrt(var + _BN_EPS)
    bias = (conv_b - mean) * scale + beta
    return (scale.reshape(1, -1).astype(jnp.float32),
            bias.reshape(1, -1).astype(jnp.float32))


def _compiler_params(n_axes):
    return pltpu.CompilerParams(dimension_semantics=("parallel",) * n_axes,
                                vmem_limit_bytes=_VMEM_LIMIT)


def _expand_conv_bn_silu(x4, w_folded, bias, out_dtype):
    n, h, w, cin = x4.shape
    cexp = w_folded.shape[1]
    row_bytes = w * (cin * x4.dtype.itemsize + cexp * jnp.dtype(out_dtype).itemsize)
    th = _pick_h_tile(h, row_bytes, _STEP_BYTES_BUDGET)
    return pl.pallas_call(
        _expand_kernel,
        out_shape=jax.ShapeDtypeStruct((n, h, w, cexp), out_dtype),
        grid=(n, h // th),
        in_specs=[
            pl.BlockSpec((1, th, w, cin), lambda i, j: (i, j, 0, 0)),
            pl.BlockSpec((cin, cexp), lambda i, j: (0, 0)),
            pl.BlockSpec((1, cexp), lambda i, j: (0, 0)),
        ],
        out_specs=pl.BlockSpec((1, th, w, cexp), lambda i, j: (i, j, 0, 0)),
        compiler_params=_compiler_params(2),
    )(x4, w_folded, bias)


def _depthwise_conv_bn_silu_pool(x4, w_taps, bias, *, ksize, stride, out_dtype):
    if stride != 1:
        raise NotImplementedError("stride=2 depthwise conv not implemented")  # TODO(synk)
    n, h, w, c = x4.shape
    pad = (ksize - 1) // 2
    hp, wp = h + 2 * pad, w + 2 * pad
    ch_bytes = h * w * (x4.dtype.itemsize + jnp.dtype(out_dtype).itemsize) + hp * wp * 4
    tc = _pick_channel_tile(c, ch_bytes, _DW_STEP_BYTES_BUDGET)
    y, pooled = pl.pallas_call(
        functools.partial(_dw_kernel, ksize=ksize, pad=pad),
        out_shape=(jax.ShapeDtypeStruct((n, h, w, c), out_dtype),
                   jax.ShapeDtypeStruct((n, 1, c), jnp.float32)),
        grid=(n, c // tc),
        in_specs=[
            pl.BlockSpec((1, h, w, tc), lambda i, ci: (i, 0, 0, ci)),
            pl.BlockSpec((ksize * ksize, tc), lambda i, ci: (0, ci)),
            pl.BlockSpec((1, tc), lambda i, ci: (0, ci)),
        ],
        out_specs=(pl.BlockSpec((1, h, w, tc), lambda i, ci: (i, 0, 0, ci)),
                   pl.BlockSpec((1, 1, tc), lambda i, ci: (i, 0, ci))),
        scratch_shapes=[pltpu.VMEM((hp, wp, tc), jnp.float32)],
        compiler_params=_compiler_params(2),
    )(x4, w_taps, bias)
    return y, pooled.reshape(n, c)


def _project_fused(x4, w_folded, bias, *, se_scale, residual, keep_factor, out_dtype):
    n, h, w, cexp = x4.shape
    cout = w_folded.shape[1]
    with_se = se_scale is not None
    with_res = residual is not None

    row_bytes = w * (cexp * x4.dtype.itemsize + cout * jnp.dtype(out_dtype).itemsize)
    if with_res:
        row_bytes += w * cout * residual.dtype.itemsize
    th = _pick_h_tile(h, row_bytes, _STEP_BYTES_BUDGET)

    def tile4(i, j, *_):          # activation / residual / output strips
        return (i, j, 0, 0)

    def per_sample(i, j, *_):     # SE scale: one row per sample
        return (i, 0, 0)

    def replicated(i, j, *_):     # weights / bias
        return (0, 0)

    in_specs = [pl.BlockSpec((1, th, w, cexp), tile4)]
    args = [x4]
    if with_se:
        in_specs.append(pl.BlockSpec((1, 1, cexp), per_sample))
        args.append(se_scale.reshape(n, 1, cexp))
    in_specs += [pl.BlockSpec((cexp, cout), replicated), pl.BlockSpec((1, cout), replicated)]
    args += [w_folded, bias]
    if with_res:
        in_specs.append(pl.BlockSpec((1, th, w, cout), tile4))
        args.append(residual)

    grid_spec = pltpu.PrefetchScalarGridSpec(
        num_scalar_prefetch=1 if with_res else 0,
        grid=(n, h // th),
        in_specs=in_specs,
        out_specs=pl.BlockSpec((1, th, w, cout), tile4),
    )
    call = pl.pallas_call(
        functools.partial(_project_kernel, with_se=with_se, with_res=with_res),
        out_shape=jax.ShapeDtypeStruct((n, h, w, cout), out_dtype),
        grid_spec=grid_spec,
        compiler_params=_compiler_params(2),
    )
    if with_res:
        return call(keep_factor, *args)
    return call(*args)


# ----------------------------------------------------------------------------- forward


def drop_path_keep_factor(rng, n, drop_prob, training=True):
    """(N,) factor = floor(keep_p + U[0,1)) / keep_p — matches torch drop_path semantics."""
    if drop_prob == 0.0 or not training:
        return jnp.ones((n,), jnp.float32)
    keep_p = 1.0 - float(drop_prob)
    u = jax.random.uniform(rng, (n,), dtype=jnp.float32)
    return jnp.floor(jnp.float32(keep_p) + u) / jnp.float32(keep_p)


def mbconv_forward_nhwc(params, x, *, kernel_size, stride, keep_factor=None,
                        compute_dtype=None):
    """MBConv forward, NHWC in / NHWC out (keep activations NHWC end-to-end on TPU)."""
    n, h, w, cin = x.shape
    cdt = jnp.dtype(compute_dtype) if compute_dtype is not None else x.dtype

    y = x.astype(cdt)
    if 'expand' in params:
        p = params['expand']
        scale, bias = _fold_bn(p['b'], p['gamma'], p['beta'], p['mean'], p['var'])
        y = _expand_conv_bn_silu(y, (p['w'] * scale).astype(cdt), bias, cdt)
    cexp = y.shape[-1]

    p = params['dw']
    scale, bias = _fold_bn(p['b'], p['gamma'], p['beta'], p['mean'], p['var'])
    w_taps = (p['w'].reshape(kernel_size * kernel_size, cexp) * scale).astype(jnp.float32)
    y, pooled = _depthwise_conv_bn_silu_pool(y, w_taps, bias, ksize=kernel_size,
                                             stride=stride, out_dtype=cdt)
    ho, wo = y.shape[1], y.shape[2]

    if 'se' in params:
        # SE squeeze/excite FCs on the pooled (N, Cexp) are microscopic -> plain JAX.
        p = params['se']
        m = pooled * (1.0 / float(ho * wo))
        hdn = m @ p['w1'] + p['b1']
        hdn = hdn * _sigmoid(hdn)
        se_scale = _sigmoid(hdn @ p['w2'] + p['b2'])           # (N, Cexp) f32
    else:
        se_scale = None

    p = params['project']
    cout = p['w'].shape[1]
    scale, bias = _fold_bn(p['b'], p['gamma'], p['beta'], p['mean'], p['var'])
    use_res = (cin == cout) and (stride == 1)
    if use_res and keep_factor is None:
        keep_factor = jnp.ones((n,), jnp.float32)
    return _project_fused(
        y, (p['w'] * scale).astype(cdt), bias,
        se_scale=se_scale,
        residual=x if use_res else None,
        keep_factor=(keep_factor.reshape(n).astype(jnp.float32) if use_res else None),
        out_dtype=x.dtype)


def mbconv_forward_pallas(params, x_nchw, *, kernel_size, stride, keep_factor=None,
                          compute_dtype=None):
    """Drop-in NCHW interface matching the PyTorch module.  In a full network keep the
    activations NHWC end-to-end (mbconv_forward_nhwc) and skip these two transposes."""
    x = jnp.transpose(x_nchw, (0, 2, 3, 1))
    y = mbconv_forward_nhwc(params, x, kernel_size=kernel_size, stride=stride,
                            keep_factor=keep_factor, compute_dtype=compute_dtype)
    return jnp.transpose(y, (0, 3, 1, 2))


# ----------------------------------------------------------------------------- reference


def mbconv_reference_nhwc(params, x, *, kernel_size, stride, keep_factor=None):
    """Pure-JAX reference (unfused BN), used only to validate the Pallas path."""
    n, h, w, cin = x.shape
    xf = x.astype(jnp.float32)
    y = xf

    def bn(t, p):
        return (t - p['mean']) / jnp.sqrt(p['var'] + _BN_EPS) * p['gamma'] + p['beta']

    if 'expand' in params:
        p = params['expand']
        y = jnp.einsum('nhwc,cd->nhwd', y, p['w']) + p['b']
        y = bn(y, p)
        y = y * _sigmoid(y)

    p = params['dw']
    k = kernel_size
    pad = (k - 1) // 2
    wdw = p['w'].reshape(k, k, 1, -1)
    y = lax.conv_general_dilated(
        y, wdw, window_strides=(stride, stride), padding=((pad, pad), (pad, pad)),
        dimension_numbers=('NHWC', 'HWIO', 'NHWC'),
        feature_group_count=y.shape[-1]) + p['b']
    y = bn(y, p)
    y = y * _sigmoid(y)

    if 'se' in params:
        p = params['se']
        s = jnp.mean(y, axis=(1, 2))
        s = s @ p['w1'] + p['b1']
        s = s * _sigmoid(s)
        s = _sigmoid(s @ p['w2'] + p['b2'])
        y = y * s[:, None, None, :]

    p = params['project']
    cout = p['w'].shape[1]
    y = jnp.einsum('nhwc,cd->nhwd', y, p['w']) + p['b']
    y = bn(y, p)

    if cin == cout and stride == 1:
        if keep_factor is None:
            keep_factor = jnp.ones((n,), jnp.float32)
        y = y * keep_factor[:, None, None, None] + xf
    return y


# ----------------------------------------------------------------------------- params


def _init_bn(key, c):
    k1, k2, k3, k4 = jax.random.split(key, 4)
    return dict(
        gamma=jax.random.uniform(k1, (c,), jnp.float32, 0.5, 1.5),
        beta=0.1 * jax.random.normal(k2, (c,), jnp.float32),
        mean=0.1 * jax.random.normal(k3, (c,), jnp.float32),
        var=jax.random.uniform(k4, (c,), jnp.float32, 0.5, 1.5),
    )


def init_mbconv_params(key, cin, expand_rate, cout, ksize, use_se=True, squeeze_rate=4):
    cexp = cin * expand_rate
    ks = jax.random.split(key, 13)
    params = {}
    if cexp != cin:
        params['expand'] = dict(
            w=0.3 * jax.random.normal(ks[0], (cin, cexp), jnp.float32),
            b=0.1 * jax.random.normal(ks[1], (cexp,), jnp.float32),
            **_init_bn(ks[2], cexp))
    params['dw'] = dict(
        w=0.3 * jax.random.normal(ks[3], (ksize, ksize, cexp), jnp.float32),
        b=0.1 * jax.random.normal(ks[4], (cexp,), jnp.float32),
        **_init_bn(ks[5], cexp))
    if use_se:
        csq = max(1, cin // squeeze_rate)
        params['se'] = dict(
            w1=0.3 * jax.random.normal(ks[6], (cexp, csq), jnp.float32),
            b1=0.1 * jax.random.normal(ks[7], (csq,), jnp.float32),
            w2=0.3 * jax.random.normal(ks[8], (csq, cexp), jnp.float32),
            b2=0.1 * jax.random.normal(ks[9], (cexp,), jnp.float32))
    params['project'] = dict(
        w=0.3 * jax.random.normal(ks[10], (cexp, cout), jnp.float32),
        b=0.1 * jax.random.normal(ks[11], (cout,), jnp.float32),
        **_init_bn(ks[12], cout))
    return params


# ----------------------------------------------------------------------------- demo


if __name__ == "__main__":
    key = jax.random.PRNGKey(0)
    k_params, k_x, k_drop = jax.random.split(key, 3)

    N, C_IN, H, W = 2, 8, 16, 16
    EXPAND_RATE, KSIZE, STRIDE = 4, 3, 1
    C_OUT = C_IN                      # input_ch == output_ch and stride == 1 -> residual + drop-path
    DROP_PROB = 0.2

    params = init_mbconv_params(k_params, C_IN, EXPAND_RATE, C_OUT, KSIZE, use_se=True)
    x_nhwc = jax.random.normal(k_x, (N, H, W, C_IN), dtype=jnp.float32)
    keep_factor = drop_path_keep_factor(k_drop, N, DROP_PROB, training=True)

    ref = mbconv_reference_nhwc(params, x_nhwc, kernel_size=KSIZE, stride=STRIDE,
                                keep_factor=keep_factor)

    # f32 path, NHWC-native (no layout transposes): exact module semantics.
    out = mbconv_forward_nhwc(params, x_nhwc, kernel_size=KSIZE, stride=STRIDE,
                              keep_factor=keep_factor)
    out = jax.block_until_ready(out)
    assert out.shape == x_nhwc.shape
    np.testing.assert_allclose(np.asarray(out), np.asarray(ref), rtol=1e-4, atol=1e-4)

    # NCHW drop-in adapter (matches the PyTorch module's layout).
    x_nchw = jnp.transpose(x_nhwc, (0, 3, 1, 2))
    out_nchw = jax.block_until_ready(
        mbconv_forward_pallas(params, x_nchw, kernel_size=KSIZE, stride=STRIDE,
                              keep_factor=keep_factor))
    np.testing.assert_allclose(np.asarray(out_nchw),
                               np.transpose(np.asarray(ref), (0, 3, 1, 2)),
                               rtol=1e-4, atol=1e-4)

    # bf16 mixed-precision mode (bf16 matmul operands / intermediates, f32 accumulation).
    out_bf16 = jax.block_until_ready(
        mbconv_forward_nhwc(params, x_nhwc, kernel_size=KSIZE, stride=STRIDE,
                            keep_factor=keep_factor, compute_dtype=jnp.bfloat16))
    np.testing.assert_allclose(np.asarray(out_bf16), np.asarray(ref), rtol=5e-2, atol=5e-2)

    print("KERNEL_OK")
</pallas_src>

<mosaic_0001>
module attributes {stable_mosaic.version = 11 : i64} {
  func.func @_expand_kernel(%arg0: i32, %arg1: i32, %arg2: memref<1x16x16x8xf32, #tpu.memory_space<vmem>>, %arg3: memref<8x32xf32, #tpu.memory_space<vmem>>, %arg4: memref<1x32xf32, #tpu.memory_space<vmem>>, %arg5: memref<1x16x16x32xf32, #tpu.memory_space<vmem>>) attributes {dimension_semantics = [#tpu.dimension_semantics<parallel>, #tpu.dimension_semantics<parallel>], iteration_bounds = array<i64: 2, 1>, scalar_prefetch = 0 : i64, scratch_operands = 0 : i64, tpu.core_type = #tpu.core_type<tc>, window_params = [{transform_indices = @transform_0, window_bounds = array<i64: 1, 16, 16, 8>}, {pipeline_mode = #tpu.pipeline_mode<synchronous>, transform_indices = @transform_1, window_bounds = array<i64: 8, 32>}, {pipeline_mode = #tpu.pipeline_mode<synchronous>, transform_indices = @transform_2, window_bounds = array<i64: 1, 32>}, {transform_indices = @transform_3, window_bounds = array<i64: 1, 16, 16, 32>}]} {
    %c0 = arith.constant 0 : index
    %c0_0 = arith.constant 0 : index
    %c0_1 = arith.constant 0 : index
    %c0_2 = arith.constant 0 : index
    %0 = vector.load %arg2[%c0, %c0_0, %c0_1, %c0_2] : memref<1x16x16x8xf32, #tpu.memory_space<vmem>>, vector<1x16x16x8xf32>
    %1 = vector.shape_cast %0 : vector<1x16x16x8xf32> to vector<16x16x8xf32>
    %2 = vector.shape_cast %1 : vector<16x16x8xf32> to vector<256x8xf32>
    %c0_3 = arith.constant 0 : index
    %c0_4 = arith.constant 0 : index
    %3 = vector.load %arg3[%c0_3, %c0_4] : memref<8x32xf32, #tpu.memory_space<vmem>>, vector<8x32xf32>
    %cst = arith.constant dense<0.000000e+00> : vector<256x32xf32>
    %4 = tpu.matmul %2, %3, %cst {dimension_numbers = #tpu.dot_dimension_numbers<[1], [0], [0], [1], [0, 0, 1, 1], [], []>} : vector<256x8xf32>, vector<8x32xf32>, vector<256x32xf32> -> vector<256x32xf32>
    %c0_5 = arith.constant 0 : index
    %c0_6 = arith.constant 0 : index
    %5 = vector.load %arg4[%c0_5, %c0_6] : memref<1x32xf32, #tpu.memory_space<vmem>>, vector<1x32xf32>
    %6 = vector.broadcast %5 : vector<1x32xf32> to vector<256x32xf32>
    %7 = arith.addf %4, %6 : vector<256x32xf32>
    %cst_7 = arith.constant 0.000000e+00 : f32
    %8 = vector.broadcast %cst_7 : f32 to vector<256x32xf32>
    %9 = arith.subf %8, %7 : vector<256x32xf32>
    %10 = math.exp %9 : vector<256x32xf32>
    %cst_8 = arith.constant 1.000000e+00 : f32
    %11 = vector.broadcast %cst_8 : f32 to vector<256x32xf32>
    %12 = arith.addf %11, %10 : vector<256x32xf32>
    %cst_9 = arith.constant 1.000000e+00 : f32
    %13 = vector.broadcast %cst_9 : f32 to vector<256x32xf32>
    %14 = arith.divf %13, %12 : vector<256x32xf32>
    %15 = arith.mulf %7, %14 : vector<256x32xf32>
    %16 = vector.shape_cast %15 : vector<256x32xf32> to vector<16x16x32xf32>
    %c0_10 = arith.constant 0 : index
    %c0_11 = arith.constant 0 : index
    %c0_12 = arith.constant 0 : index
    %c0_13 = arith.constant 0 : index
    %17 = vector.load %arg5[%c0_10, %c0_11, %c0_12, %c0_13] : memref<1x16x16x32xf32, #tpu.memory_space<vmem>>, vector<1x16x16x32xf32>
    %18 = vector.shape_cast %17 : vector<1x16x16x32xf32> to vector<16x16x32xf32>
    %19 = vector.shape_cast %16 : vector<16x16x32xf32> to vector<1x16x16x32xf32>
    tpu.vector_store %arg5[%c0_10, %c0_11, %c0_12, %c0_13], %19 {strides = array<i32>} : memref<1x16x16x32xf32, #tpu.memory_space<vmem>>, vector<1x16x16x32xf32>,
    return
  }
  func.func @transform_0(%arg0: i32, %arg1: i32) -> (i32, i32, i32, i32) {
    %c0_i32 = arith.constant 0 : i32
    %c0_i32_0 = arith.constant 0 : i32
    %c0_i32_1 = arith.constant 0 : i32
    return %arg0, %arg1, %c0_i32, %c0_i32_0 : i32, i32, i32, i32
  }
  func.func @transform_1(%arg0: i32, %arg1: i32) -> (i32, i32) {
    %c0_i32 = arith.constant 0 : i32
    %c0_i32_0 = arith.constant 0 : i32
    %c0_i32_1 = arith.constant 0 : i32
    return %c0_i32, %c0_i32_0 : i32, i32
  }
  func.func @transform_2(%arg0: i32, %arg1: i32) -> (i32, i32) {
    %c0_i32 = arith.constant 0 : i32
    %c0_i32_0 = arith.constant 0 : i32
    %c0_i32_1 = arith.constant 0 : i32
    return %c0_i32, %c0_i32_0 : i32, i32
  }
  func.func @transform_3(%arg0: i32, %arg1: i32) -> (i32, i32, i32, i32) {
    %c0_i32 = arith.constant 0 : i32
    %c0_i32_0 = arith.constant 0 : i32
    %c0_i32_1 = arith.constant 0 : i32
    return %arg0, %arg1, %c0_i32, %c0_i32_0 : i32, i32, i32, i32
  }
}

</mosaic_0001>

<llo_original>
// kernel: tpu_custom_call.1
$region0: #{tpu_custom_call.1}
  #allocation0 [shape = 'u32[]', space=smem, size = 0x4, offset = 0x4, fixed_abs, tag = 'smem constant byte address 0x4 - core index']
  #allocation1 [shape = 'u32[72,128]{1,0:T(1,128)}', space=vmem, size = 0x9000, scoped, tag = 'internal scratch']
  %s0 = inlined_call_operand.vmem [shape: f32[2,16,16,8], index: 0, kind: input, shape index: {}]
  %s1 = inlined_call_operand.vmem [shape: f32[8,32], index: 1, kind: input, shape index: {}]
  %s2 = inlined_call_operand.vmem [shape: f32[1,32], index: 2, kind: input, shape index: {}]
  %s3 = inlined_call_operand.hbm [shape: f32[2,16,16,32], index: 3, kind: output, shape index: {}]
  %s4 = sld [smem:[#allocation0]]
  $region45: #{tpu_custom_call.1} parent=0
    _
  %s6 = ssub.s32 1, %s4
  %s7 = scalar_select 0, %s6, %s4
  $region1: #{tpu_custom_call.1} parent=0
    #allocation2 [shape = 'u8[262144]{0}', space=vmem, size = 0x40000, scoped, tag = 'output window, operand 0']
    #allocation3 [shape = 's32[2]{0}', space=sflag, size = 0x8, scoped, tag = 'scoped memory for tpu_custom_call.1']
    %8 = vsyncpa [#allocation3], 0
    %s9 = scalar_lea.sflag [#allocation3], 1
    %10 = vsyncpa %s9, 0
    loop: start=0, step=1, limit=4
    $region2: #{tpu_custom_call.1} parent=1 // loop_pre_header
      _
    $region3: #{tpu_custom_call.1} parent=1 // loop_header
      %s12 = sphi 0, %s16
      %p13 = scmp.ge.s32.totalorder %s12, 4
      %s19 = sphi 0, %s31
      %s20 = sphi 0, %s27
      %s21 = sphi 0, %s19
      %s22 = sphi 0, %s20
      %s23 = sphi 0, %s21
      %s24 = sphi 0, %s22
      %s36 = sphi 0, %s38
      %s39 = sphi 0, %s36
      %s40 = sphi 0, %s39
      %s56 = sphi 0, %s40
      %s60 = sphi 0, %s60
      %s62 = sphi 0, %s60
      %s63 = sphi 0, %s62
      %s77 = sphi 0, %s63
      %s81 = sphi 0, %s81
      %s83 = sphi 0, %s81
      %s84 = sphi 0, %s83
      %s98 = sphi 0, %s84
      %s106 = sphi 0, %s108
      %s109 = sphi 0, %s106
      %s110 = sphi 0, %s109
      %s126 = sphi 0, %s110
    $region4: #{tpu_custom_call.1} parent=1 // loop_header_branch
      %15 = sbr.rel (%p13) target = $region8
    $region5: #{tpu_custom_call.1} parent=1 // loop_body
      %s17 = ssub.s32 %s12, 1
      %s18 = ssub.s32 %s12, 2
      %s25 = sadd.s32 1, %s20
      %p26 = scmp.ge.s32.totalorder %s25, 1
      %s27 = scalar_select %p26, 0, %s25
      %s28 = sadd.s32 1, %s19
      %s29 = scalar_select %p26, %s28, %s19
      %p30 = scmp.ge.s32.totalorder %s29, 2
      %s31 = scalar_select %p30, 0, %s29
      %s32 = ssub.s32 %s19, %s31
      %s33 = ssub.s32 %s20, %s27
      %s34 = sor.u32 %s32, %s33
      %p35 = scmp.eq.s32.totalorder %s34, 0
      %s37 = sadd.s32 %s36, 1
      %s38 = scalar_select %p35, %s36, %s37
      %p41 = pneg %p35
      %p42 = scmp.eq.s32.totalorder %s12, 1
      %p43 = por %p41, %p42
      %p44 = scmp.ne.s32.totalorder %s36, %s39
      %p45 = scmp.eq.s32.totalorder %s12, 0
      %p46 = por %p44, %p45
      %p47 = scmp.ne.s32.totalorder %s36, %s39
      %p48 = scmp.eq.s32.totalorder %s17, 1
      %p49 = por %p47, %p48
      %p50 = scmp.ne.s32.totalorder %s39, %s40
      %p51 = scmp.eq.s32.totalorder %s17, 0
      %p52 = por %p50, %p51
      %p53 = scmp.ne.s32.totalorder %s39, %s40
      %p54 = scmp.eq.s32.totalorder %s18, 1
      %p55 = por %p53, %p54
      %p57 = scmp.ne.s32.totalorder %s40, %s56
      %p58 = scmp.eq.s32.totalorder %s18, 0
      %p59 = por %p57, %p58
      %s61 = sadd.s32 %s60, 1
      %p64 = scmp.eq.s32.totalorder %s12, 1
      %p65 = scmp.ne.s32.totalorder %s60, %s62
      %p66 = scmp.eq.s32.totalorder %s12, 0
      %p67 = por %p65, %p66
      %p68 = scmp.ne.s32.totalorder %s60, %s62
      %p69 = scmp.eq.s32.totalorder %s17, 1
      %p70 = por %p68, %p69
      %p71 = scmp.ne.s32.totalorder %s62, %s63
      %p72 = scmp.eq.s32.totalorder %s17, 0
      %p73 = por %p71, %p72
      %p74 = scmp.ne.s32.totalorder %s62, %s63
      %p75 = scmp.eq.s32.totalorder %s18, 1
      %p76 = por %p74, %p75
      %p78 = scmp.ne.s32.totalorder %s63, %s77
      %p79 = scmp.eq.s32.totalorder %s18, 0
      %p80 = por %p78, %p79
      %s82 = sadd.s32 %s81, 1
      %p85 = scmp.eq.s32.totalorder %s12, 1
      %p86 = scmp.ne.s32.totalorder %s81, %s83
      %p87 = scmp.eq.s32.totalorder %s12, 0
      %p88 = por %p86, %p87
      %p89 = scmp.ne.s32.totalorder %s81, %s83
      %p90 = scmp.eq.s32.totalorder %s17, 1
      %p91 = por %p89, %p90
      %p92 = scmp.ne.s32.totalorder %s83, %s84
      %p93 = scmp.eq.s32.totalorder %s17, 0
      %p94 = por %p92, %p93
      %p95 = scmp.ne.s32.totalorder %s83, %s84
      %p96 = scmp.eq.s32.totalorder %s18, 1
      %p97 = por %p95, %p96
      %p99 = scmp.ne.s32.totalorder %s84, %s98
      %p100 = scmp.eq.s32.totalorder %s18, 0
      %p101 = por %p99, %p100
      %s102 = ssub.s32 %s19, %s31
      %s103 = ssub.s32 %s20, %s27
      %s104 = sor.u32 %s102, %s103
      %p105 = scmp.eq.s32.totalorder %s104, 0
      %s107 = sadd.s32 %s106, 1
      %s108 = scalar_select %p105, %s106, %s107
      %p111 = pneg %p105
      %p112 = scmp.eq.s32.totalorder %s12, 1
      %p113 = por %p111, %p112
      %p114 = scmp.ne.s32.totalorder %s106, %s109
      %p115 = scmp.eq.s32.totalorder %s12, 0
      %p116 = por %p114, %p115
      %p117 = scmp.ne.s32.totalorder %s106, %s109
      %p118 = scmp.eq.s32.totalorder %s17, 1
      %p119 = por %p117, %p118
      %p120 = scmp.ne.s32.totalorder %s109, %s110
      %p121 = scmp.eq.s32.totalorder %s17, 0
      %p122 = por %p120, %p121
      %p123 = scmp.ne.s32.totalorder %s109, %s110
      %p124 = scmp.eq.s32.totalorder %s18, 1
      %p125 = por %p123, %p124
      %p127 = scmp.ne.s32.totalorder %s110, %s126
      %p128 = scmp.eq.s32.totalorder %s18, 0
      %p129 = por %p127, %p128
      %p130 = scmp.le.s32.totalorder 1, %s12
      %p131 = scmp.lt.s32.totalorder %s12, 3
      %p132 = pnand %p130, %p131
      %p133 = pneg %p132
      // Predicated region
      $region9: #{tpu_custom_call.1} parent=5 // pred_check
        _
      $region10: #{tpu_custom_call.1} parent=5 // pred_check_branch
        %135 = sbr.rel (%p132) target = $region12
      $region11: #{tpu_custom_call.1} parent=5 // pred_region
        %s136 = ssub.s32 %s12, 1
        // Predicated region
        $region13: #{tpu_custom_call.1} parent=11 // pred_check
          %p137 = pneg %p73
        $region14: #{tpu_custom_call.1} parent=11 // pred_check_branch
          %139 = sbr.rel (%p137) target = $region16
        $region15: #{tpu_custom_call.1} parent=11 // pred_region
          _
        $region16: #{tpu_custom_call.1} parent=11 // pred_fallthru
          _
        // Predicated region
        $region17: #{tpu_custom_call.1} parent=11 // pred_check
          %p140 = pneg %p94
        $region18: #{tpu_custom_call.1} parent=11 // pred_check_branch
          %142 = sbr.rel (%p140) target = $region20
        $region19: #{tpu_custom_call.1} parent=11 // pred_region
          _
        $region20: #{tpu_custom_call.1} parent=11 // pred_fallthru
          _
      $region12: #{tpu_custom_call.1} parent=5 // pred_fallthru
        _
      %p143 = scmp.lt.s32.totalorder %s12, 2
      // Predicated region
      $region21: #{tpu_custom_call.1} parent=5 // pred_check
        %p144 = pneg %p143
      $region22: #{tpu_custom_call.1} parent=5 // pred_check_branch
        %146 = sbr.rel (%p144) target = $region24
      $region23: #{tpu_custom_call.1} parent=5 // pred_region
        // Predicated region
        $region25: #{tpu_custom_call.1} parent=23 // pred_check
          %p147 = pneg %p46
        $region26: #{tpu_custom_call.1} parent=23 // pred_check_branch
          %149 = sbr.rel (%p147) target = $region28
        $region27: #{tpu_custom_call.1} parent=23 // pred_region
          %s150 = smul.u32 16, %s20
          %p151 = scmp.lt.s32.totalorder %s19, 1
          %s152 = scalar_select %p151, %s19, 1
          %p153 = scmp.lt.s32.totalorder %s150, 15
          %s154 = scalar_select %p153, %s150, 15
          %s155 = smul.addr %s154, 2
          %s156 = smul.addr %s152, 32
          %s157 = sadd.s32 %s155, %s156
          %s158 = smul.addr %s157, 8
          %s159 = scalar_lea.vmem %s0, %s158
          %s160 = smul.u32 16, %s20
        $region28: #{tpu_custom_call.1} parent=23 // pred_fallthru
          _
      $region24: #{tpu_custom_call.1} parent=5 // pred_fallthru
        _
      %p161 = scmp.le.s32.totalorder 1, %s12
      %p162 = scmp.lt.s32.totalorder %s12, 3
      %p163 = pnand %p161, %p162
      %p164 = pneg %p163
      // Predicated region
      $region29: #{tpu_custom_call.1} parent=5 // pred_check
        _
      $region30: #{tpu_custom_call.1} parent=5 // pred_check_branch
        %166 = sbr.rel (%p163) target = $region32
      $region31: #{tpu_custom_call.1} parent=5 // pred_region
        %s167 = ssub.s32 %s12, 1
        %s168 = smul.u32 16, %s22
        %p169 = scmp.lt.s32.totalorder %s21, 1
        %s170 = scalar_select %p169, %s21, 1
        %p171 = scmp.lt.s32.totalorder %s168, 15
        %s172 = scalar_select %p171, %s168, 15
        %s173 = smul.addr %s172, 2
        %s174 = smul.addr %s170, 32
        %s175 = sadd.s32 %s173, %s174
        %s176 = smul.addr %s175, 8
        %s177 = scalar_lea.vmem %s0, %s176
        %p178 = pneg %p52
        %p179 = pneg %p49
        %p180 = pneg %p73
        %p181 = pneg %p70
        %p182 = pneg %p94
        %p183 = pneg %p91
        %p184 = pneg %p122
        %p185 = pneg %p119
        %s186 = sand.u32 %s109, 1
        %s187 = scalar_lea.sflag [#allocation3], %s186
        %s188 = sand.u32 %s109, 1
        %s189 = smul.addr %s188, 256
        %s190 = scalar_lea.vmem [#allocation2], %s189
        %s191 = smul.u32 16, %s22
        %p192 = scmp.lt.s32.totalorder %s21, 1
        %s193 = scalar_select %p192, %s21, 1
        %p194 = scmp.lt.s32.totalorder %s191, 15
        %s195 = scalar_select %p194, %s191, 15
        %s196 = smul.addr %s195, 2
        %s197 = smul.addr %s193, 32
        %s198 = sadd.s32 %s196, %s197
        %s199 = smul.addr %s198, 8
        %s200 = scalar_lea.vmem %s0, %s199
        %s201 = smul.u32 16, %s22
        %s202 = smul.u32 16, %s22
        %v203 = vld [vmem:[%s200] sm:$0xff]
        %v204 = vld [vmem:[%s200 + $0x8] sm:$0xff]
        %v205 = vld [vmem:[%s200 + $0x10] sm:$0xff]
        %v206 = vld [vmem:[%s200 + $0x18] sm:$0xff]
        %v207 = vld [vmem:[%s200 + $0x20] sm:$0xff]
        %v208 = vld [vmem:[%s200 + $0x28] sm:$0xff]
        %v209 = vld [vmem:[%s200 + $0x30] sm:$0xff]
        %v210 = vld [vmem:[%s200 + $0x38] sm:$0xff]
        %v211 = vld [vmem:[%s200 + $0x40] sm:$0xff]
        %v212 = vld [vmem:[%s200 + $0x48] sm:$0xff]
        %v213 = vld [vmem:[%s200 + $0x50] sm:$0xff]
        %v214 = vld [vmem:[%s200 + $0x58] sm:$0xff]
        %v215 = vld [vmem:[%s200 + $0x60] sm:$0xff]
        %v216 = vld [vmem:[%s200 + $0x68] sm:$0xff]
        %v217 = vld [vmem:[%s200 + $0x70] sm:$0xff]
        %v218 = vld [vmem:[%s200 + $0x78] sm:$0xff]
        %v219 = vld [vmem:[%s200 + $0x80] sm:$0xff]
        %v220 = vld [vmem:[%s200 + $0x88] sm:$0xff]
        %v221 = vld [vmem:[%s200 + $0x90] sm:$0xff]
        %v222 = vld [vmem:[%s200 + $0x98] sm:$0xff]
        %v223 = vld [vmem:[%s200 + $0xa0] sm:$0xff]
        %v224 = vld [vmem:[%s200 + $0xa8] sm:$0xff]
        %v225 = vld [vmem:[%s200 + $0xb0] sm:$0xff]
        %v226 = vld [vmem:[%s200 + $0xb8] sm:$0xff]
        %v227 = vld [vmem:[%s200 + $0xc0] sm:$0xff]
        %v228 = vld [vmem:[%s200 + $0xc8] sm:$0xff]
        %v229 = vld [vmem:[%s200 + $0xd0] sm:$0xff]
        %v230 = vld [vmem:[%s200 + $0xd8] sm:$0xff]
        %v231 = vld [vmem:[%s200 + $0xe0] sm:$0xff]
        %v232 = vld [vmem:[%s200 + $0xe8] sm:$0xff]
        %v233 = vld [vmem:[%s200 + $0xf0] sm:$0xff]
        %v234 = vld [vmem:[%s200 + $0xf8] sm:$0xff]
        %v235 = vld [vmem:[%s1] sm:$0xff]
        %v236 = vld [vmem:[%s2] sm:$0x1]
        %v238 = vperm.slane %v236, 0
        %vm240 = vcmask 64512
        %v242 = vsel %vm240, %v203, 0
        %v245 = vsel %vm240, %v204, 0
        %v248 = vsel %vm240, %v205, 0
        %v251 = vsel %vm240, %v206, 0
        %v254 = vsel %vm240, %v207, 0
        %v257 = vsel %vm240, %v208, 0
        %v260 = vsel %vm240, %v209, 0
        %v263 = vsel %vm240, %v210, 0
        %v266 = vsel %vm240, %v211, 0
        %v269 = vsel %vm240, %v212, 0
        %v272 = vsel %vm240, %v213, 0
        %v275 = vsel %vm240, %v214, 0
        %v278 = vsel %vm240, %v215, 0
        %v281 = vsel %vm240, %v216, 0
        %v284 = vsel %vm240, %v217, 0
        %v287 = vsel %vm240, %v218, 0
        %v290 = vsel %vm240, %v219, 0
        %v293 = vsel %vm240, %v220, 0
        %v296 = vsel %vm240, %v221, 0
        %v299 = vsel %vm240, %v222, 0
        %v302 = vsel %vm240, %v223, 0
        %v305 = vsel %vm240, %v224, 0
        %v308 = vsel %vm240, %v225, 0
        %v311 = vsel %vm240, %v226, 0
        %v314 = vsel %vm240, %v227, 0
        %v317 = vsel %vm240, %v228, 0
        %v320 = vsel %vm240, %v229, 0
        %v323 = vsel %vm240, %v230, 0
        %v326 = vsel %vm240, %v231, 0
        %v329 = vsel %vm240, %v232, 0
        %v332 = vsel %vm240, %v233, 0
        %v335 = vsel %vm240, %v234, 0
        %337 = vmatpush.msra.mxu0 0.0
        %338 = vmatpush.msra.mxu0 0.0
        %339 = vmatpush.msra.mxu0 0.0
        %340 = vmatpush.msra.mxu0 0.0
        %341 = vmatpush.msra.mxu0 0.0
        %342 = vmatpush.msra.mxu0 0.0
        %343 = vmatpush.msra.mxu0 0.0
        %344 = vmatpush.msra.mxu0 0.0
        %345 = vmatpush.msra.mxu0 0.0
        %346 = vmatpush.msra.mxu0 0.0
        %347 = vmatpush.msra.mxu0 0.0
        %348 = vmatpush.msra.mxu0 0.0
        %349 = vmatpush.msra.mxu0 0.0
        %350 = vmatpush.msra.mxu0 0.0
        %351 = vmatpush.msra.mxu0 0.0
        %352 = vmatpush.msra.mxu0 %v235
        %353 = vmatmul.f32.gmra.mxu0 %v242
        %v354 = vpop.f32.mrf.mxu0
        %v355 = vadd.f32 %v238, %v354
        %356 = vmatmul.f32.gmra.mxu0 %v245
        %v357 = vpop.f32.mrf.mxu0
        %v358 = vadd.f32 %v238, %v357
        %359 = vmatmul.f32.gmra.mxu0 %v248
        %v360 = vpop.f32.mrf.mxu0
        %v361 = vadd.f32 %v238, %v360
        %362 = vmatmul.f32.gmra.mxu0 %v251
        %v363 = vpop.f32.mrf.mxu0
        %v364 = vadd.f32 %v238, %v363
        %365 = vmatmul.f32.gmra.mxu0 %v254
        %v366 = vpop.f32.mrf.mxu0
        %v367 = vadd.f32 %v238, %v366
        %368 = vmatmul.f32.gmra.mxu0 %v257
        %v369 = vpop.f32.mrf.mxu0
        %v370 = vadd.f32 %v238, %v369
        %371 = vmatmul.f32.gmra.mxu0 %v260
        %v372 = vpop.f32.mrf.mxu0
        %v373 = vadd.f32 %v238, %v372
        %374 = vmatmul.f32.gmra.mxu0 %v263
        %v375 = vpop.f32.mrf.mxu0
        %v376 = vadd.f32 %v238, %v375
        %377 = vmatmul.f32.gmra.mxu0 %v266
        %v378 = vpop.f32.mrf.mxu0
        %v379 = vadd.f32 %v238, %v378
        %380 = vmatmul.f32.gmra.mxu0 %v269
        %v381 = vpop.f32.mrf.mxu0
        %v382 = vadd.f32 %v238, %v381
        %383 = vmatmul.f32.gmra.mxu0 %v272
        %v384 = vpop.f32.mrf.mxu0
        %v385 = vadd.f32 %v238, %v384
        %386 = vmatmul.f32.gmra.mxu0 %v275
        %v387 = vpop.f32.mrf.mxu0
        %v388 = vadd.f32 %v238, %v387
        %389 = vmatmul.f32.gmra.mxu0 %v278
        %v390 = vpop.f32.mrf.mxu0
        %v391 = vadd.f32 %v238, %v390
        %392 = vmatmul.f32.gmra.mxu0 %v281
        %v393 = vpop.f32.mrf.mxu0
        %v394 = vadd.f32 %v238, %v393
        %395 = vmatmul.f32.gmra.mxu0 %v284
        %v396 = vpop.f32.mrf.mxu0
        %v397 = vadd.f32 %v238, %v396
        %398 = vmatmul.f32.gmra.mxu0 %v287
        %v399 = vpop.f32.mrf.mxu0
        %v400 = vadd.f32 %v238, %v399
        %401 = vmatmul.f32.gmra.mxu0 %v290
        %v402 = vpop.f32.mrf.mxu0
        %v403 = vadd.f32 %v238, %v402
        %404 = vmatmul.f32.gmra.mxu0 %v293
        %v405 = vpop.f32.mrf.mxu0
        %v406 = vadd.f32 %v238, %v405
        %407 = vmatmul.f32.gmra.mxu0 %v296
        %v408 = vpop.f32.mrf.mxu0
        %v409 = vadd.f32 %v238, %v408
        %410 = vmatmul.f32.gmra.mxu0 %v299
        %v411 = vpop.f32.mrf.mxu0
        %v412 = vadd.f32 %v238, %v411
        %413 = vmatmul.f32.gmra.mxu0 %v302
        %v414 = vpop.f32.mrf.mxu0
        %v415 = vadd.f32 %v238, %v414
        %416 = vmatmul.f32.gmra.mxu0 %v305
        %v417 = vpop.f32.mrf.mxu0
        %v418 = vadd.f32 %v238, %v417
        %419 = vmatmul.f32.gmra.mxu0 %v308
        %v420 = vpop.f32.mrf.mxu0
        %v421 = vadd.f32 %v238, %v420
        %422 = vmatmul.f32.gmra.mxu0 %v311
        %v423 = vpop.f32.mrf.mxu0
        %v424 = vadd.f32 %v238, %v423
        %425 = vmatmul.f32.gmra.mxu0 %v314
        %v426 = vpop.f32.mrf.mxu0
        %v427 = vadd.f32 %v238, %v426
        %428 = vmatmul.f32.gmra.mxu0 %v317
        %v429 = vpop.f32.mrf.mxu0
        %v430 = vadd.f32 %v238, %v429
        %431 = vmatmul.f32.gmra.mxu0 %v320
        %v432 = vpop.f32.mrf.mxu0
        %v433 = vadd.f32 %v238, %v432
        %434 = vmatmul.f32.gmra.mxu0 %v323
        %v435 = vpop.f32.mrf.mxu0
        %v436 = vadd.f32 %v238, %v435
        %437 = vmatmul.f32.gmra.mxu0 %v326
        %v438 = vpop.f32.mrf.mxu0
        %v439 = vadd.f32 %v238, %v438
        %440 = vmatmul.f32.gmra.mxu0 %v329
        %v441 = vpop.f32.mrf.mxu0
        %v442 = vadd.f32 %v238, %v441
        %443 = vmatmul.f32.gmra.mxu0 %v332
        %v444 = vpop.f32.mrf.mxu0
        %v445 = vadd.f32 %v238, %v444
        %446 = vmatmul.f32.gmra.mxu0 %v335
        %v447 = vpop.f32.mrf.mxu0
        %v448 = vadd.f32 %v238, %v447
        %449 = vdwg.mxu0
        %v450 = vsub.f32 0.0, %v355
        %v451 = vsub.f32 0.0, %v358
        %v452 = vsub.f32 0.0, %v361
        %v453 = vsub.f32 0.0, %v364
        %v454 = vsub.f32 0.0, %v367
        %v455 = vsub.f32 0.0, %v370
        %v456 = vsub.f32 0.0, %v373
        %v457 = vsub.f32 0.0, %v376
        %v458 = vsub.f32 0.0, %v379
        %v459 = vsub.f32 0.0, %v382
        %v460 = vsub.f32 0.0, %v385
        %v461 = vsub.f32 0.0, %v388
        %v462 = vsub.f32 0.0, %v391
        %v463 = vsub.f32 0.0, %v394
        %v464 = vsub.f32 0.0, %v397
        %v465 = vsub.f32 0.0, %v400
        %v466 = vsub.f32 0.0, %v403
        %v467 = vsub.f32 0.0, %v406
        %v468 = vsub.f32 0.0, %v409
        %v469 = vsub.f32 0.0, %v412
        %v470 = vsub.f32 0.0, %v415
        %v471 = vsub.f32 0.0, %v418
        %v472 = vsub.f32 0.0, %v421
        %v473 = vsub.f32 0.0, %v424
        %v474 = vsub.f32 0.0, %v427
        %v475 = vsub.f32 0.0, %v430
        %v476 = vsub.f32 0.0, %v433
        %v477 = vsub.f32 0.0, %v436
        %v478 = vsub.f32 0.0, %v439
        %v479 = vsub.f32 0.0, %v442
        %v480 = vsub.f32 0.0, %v445
        %v481 = vsub.f32 0.0, %v448
        %v482 = vmul.f32 %v450, 1.442695
        %v483 = vpow.pop %v482
        %v484 = vmul.f32 %v451, 1.442695
        %v485 = vpow.pop %v484
        %v486 = vmul.f32 %v452, 1.442695
        %v487 = vpow.pop %v486
        %v488 = vmul.f32 %v453, 1.442695
        %v489 = vpow.pop %v488
        %v490 = vmul.f32 %v454, 1.442695
        %v491 = vpow.pop %v490
        %v492 = vmul.f32 %v455, 1.442695
        %v493 = vpow.pop %v492
        %v494 = vmul.f32 %v456, 1.442695
        %v495 = vpow.pop %v494
        %v496 = vmul.f32 %v457, 1.442695
        %v497 = vpow.pop %v496
        %v498 = vmul.f32 %v458, 1.442695
        %v499 = vpow.pop %v498
        %v500 = vmul.f32 %v459, 1.442695
        %v501 = vpow.pop %v500
        %v502 = vmul.f32 %v460, 1.442695
        %v503 = vpow.pop %v502
        %v504 = vmul.f32 %v461, 1.442695
        %v505 = vpow.pop %v504
        %v506 = vmul.f32 %v462, 1.442695
        %v507 = vpow.pop %v506
        %v508 = vmul.f32 %v463, 1.442695
        %v509 = vpow.pop %v508
        %v510 = vmul.f32 %v464, 1.442695
        %v511 = vpow.pop %v510
        %v512 = vmul.f32 %v465, 1.442695
        %v513 = vpow.pop %v512
        %v514 = vmul.f32 %v466, 1.442695
        %v515 = vpow.pop %v514
        %v516 = vmul.f32 %v467, 1.442695
        %v517 = vpow.pop %v516
        %v518 = vmul.f32 %v468, 1.442695
        %v519 = vpow.pop %v518
        %v520 = vmul.f32 %v469, 1.442695
        %v521 = vpow.pop %v520
        %v522 = vmul.f32 %v470, 1.442695
        %v523 = vpow.pop %v522
        %v524 = vmul.f32 %v471, 1.442695
        %v525 = vpow.pop %v524
        %v526 = vmul.f32 %v472, 1.442695
        %v527 = vpow.pop %v526
        %v528 = vmul.f32 %v473, 1.442695
        %v529 = vpow.pop %v528
        %v530 = vmul.f32 %v474, 1.442695
        %v531 = vpow.pop %v530
        %v532 = vmul.f32 %v475, 1.442695
        %v533 = vpow.pop %v532
        %v534 = vmul.f32 %v476, 1.442695
        %v535 = vpow.pop %v534
        %v536 = vmul.f32 %v477, 1.442695
        %v537 = vpow.pop %v536
        %v538 = vmul.f32 %v478, 1.442695
        %v539 = vpow.pop %v538
        %v540 = vmul.f32 %v479, 1.442695
        %v541 = vpow.pop %v540
        %v542 = vmul.f32 %v480, 1.442695
        %v543 = vpow.pop %v542
        %v544 = vmul.f32 %v481, 1.442695
        %v545 = vpow.pop %v544
        %v546 = vadd.f32 %v483, 1.0
        %v547 = vadd.f32 %v485, 1.0
        %v548 = vadd.f32 %v487, 1.0
        %v549 = vadd.f32 %v489, 1.0
        %v550 = vadd.f32 %v491, 1.0
        %v551 = vadd.f32 %v493, 1.0
        %v552 = vadd.f32 %v495, 1.0
        %v553 = vadd.f32 %v497, 1.0
        %v554 = vadd.f32 %v499, 1.0
        %v555 = vadd.f32 %v501, 1.0
        %v556 = vadd.f32 %v503, 1.0
        %v557 = vadd.f32 %v505, 1.0
        %v558 = vadd.f32 %v507, 1.0
        %v559 = vadd.f32 %v509, 1.0
        %v560 = vadd.f32 %v511, 1.0
        %v561 = vadd.f32 %v513, 1.0
        %v562 = vadd.f32 %v515, 1.0
        %v563 = vadd.f32 %v517, 1.0
        %v564 = vadd.f32 %v519, 1.0
        %v565 = vadd.f32 %v521, 1.0
        %v566 = vadd.f32 %v523, 1.0
        %v567 = vadd.f32 %v525, 1.0
        %v568 = vadd.f32 %v527, 1.0
        %v569 = vadd.f32 %v529, 1.0
        %v570 = vadd.f32 %v531, 1.0
        %v571 = vadd.f32 %v533, 1.0
        %v572 = vadd.f32 %v535, 1.0
        %v573 = vadd.f32 %v537, 1.0
        %v574 = vadd.f32 %v539, 1.0
        %v575 = vadd.f32 %v541, 1.0
        %v576 = vadd.f32 %v543, 1.0
        %v577 = vadd.f32 %v545, 1.0
        %v578 = vrcp.pop %v546
        %v579 = vmul.f32 %v546, %v578
        %v580 = vsub.f32 1.0, %v579
        %v581 = vmul.f32 %v578, %v580
        %v582 = vadd.f32 %v578, %v581
        %vm583 = vweird.f32 %v546
        %vm584 = vweird.f32 %v578
        %vm585 = vmor %vm583, %vm584
        %v586 = vsel %vm585, %v578, %v582
        %v587 = vand.u32 2147483647, %v546
        %vm588 = vcmp.eq.f32.partialorder %v587, 8.507059e+37
        %v589 = vand.u32 %v546, 2147483648
        %v590 = vor.u32 1.1754944e-38, %v589
        %v591 = vsel %vm588, %v590, %v586
        %v592 = vmul.f32 1.0, %v591
        %v593 = vrcp.pop %v547
        %v594 = vmul.f32 %v547, %v593
        %v595 = vsub.f32 1.0, %v594
        %v596 = vmul.f32 %v593, %v595
        %v597 = vadd.f32 %v593, %v596
        %vm598 = vweird.f32 %v547
        %vm599 = vweird.f32 %v593
        %vm600 = vmor %vm598, %vm599
        %v601 = vsel %vm600, %v593, %v597
        %v602 = vand.u32 2147483647, %v547
        %vm603 = vcmp.eq.f32.partialorder %v602, 8.507059e+37
        %v604 = vand.u32 %v547, 2147483648
        %v605 = vor.u32 1.1754944e-38, %v604
        %v606 = vsel %vm603, %v605, %v601
        %v607 = vmul.f32 1.0, %v606
        %v608 = vrcp.pop %v548
        %v609 = vmul.f32 %v548, %v608
        %v610 = vsub.f32 1.0, %v609
        %v611 = vmul.f32 %v608, %v610
        %v612 = vadd.f32 %v608, %v611
        %vm613 = vweird.f32 %v548
        %vm614 = vweird.f32 %v608
        %vm615 = vmor %vm613, %vm614
        %v616 = vsel %vm615, %v608, %v612
        %v617 = vand.u32 2147483647, %v548
        %vm618 = vcmp.eq.f32.partialorder %v617, 8.507059e+37
        %v619 = vand.u32 %v548, 2147483648
        %v620 = vor.u32 1.1754944e-38, %v619
        %v621 = vsel %vm618, %v620, %v616
        %v622 = vmul.f32 1.0, %v621
        %v623 = vrcp.pop %v549
        %v624 = vmul.f32 %v549, %v623
        %v625 = vsub.f32 1.0, %v624
        %v626 = vmul.f32 %v623, %v625
        %v627 = vadd.f32 %v623, %v626
        %vm628 = vweird.f32 %v549
        %vm629 = vweird.f32 %v623
        %vm630 = vmor %vm628, %vm629
        %v631 = vsel %vm630, %v623, %v627
        %v632 = vand.u32 2147483647, %v549
        %vm633 = vcmp.eq.f32.partialorder %v632, 8.507059e+37
        %v634 = vand.u32 %v549, 2147483648
        %v635 = vor.u32 1.1754944e-38, %v634
        %v636 = vsel %vm633, %v635, %v631
        %v637 = vmul.f32 1.0, %v636
        %v638 = vrcp.pop %v550
        %v639 = vmul.f32 %v550, %v638
        %v640 = vsub.f32 1.0, %v639
        %v641 = vmul.f32 %v638, %v640
        %v642 = vadd.f32 %v638, %v641
        %vm643 = vweird.f32 %v550
        %vm644 = vweird.f32 %v638
        %vm645 = vmor %vm643, %vm644
        %v646 = vsel %vm645, %v638, %v642
        %v647 = vand.u32 2147483647, %v550
        %vm648 = vcmp.eq.f32.partialorder %v647, 8.507059e+37
        %v649 = vand.u32 %v550, 2147483648
        %v650 = vor.u32 1.1754944e-38, %v649
        %v651 = vsel %vm648, %v650, %v646
        %v652 = vmul.f32 1.0, %v651
        %v653 = vrcp.pop %v551
        %v654 = vmul.f32 %v551, %v653
        %v655 = vsub.f32 1.0, %v654
        %v656 = vmul.f32 %v653, %v655
        %v657 = vadd.f32 %v653, %v656
        %vm658 = vweird.f32 %v551
        %vm659 = vweird.f32 %v653
        %vm660 = vmor %vm658, %vm659
        %v661 = vsel %vm660, %v653, %v657
        %v662 = vand.u32 2147483647, %v551
        %vm663 = vcmp.eq.f32.partialorder %v662, 8.507059e+37
        %v664 = vand.u32 %v551, 2147483648
        %v665 = vor.u32 1.1754944e-38, %v664
        %v666 = vsel %vm663, %v665, %v661
        %v667 = vmul.f32 1.0, %v666
        %v668 = vrcp.pop %v552
        %v669 = vmul.f32 %v552, %v668
        %v670 = vsub.f32 1.0, %v669
        %v671 = vmul.f32 %v668, %v670
        %v672 = vadd.f32 %v668, %v671
        %vm673 = vweird.f32 %v552
        %vm674 = vweird.f32 %v668
        %vm675 = vmor %vm673, %vm674
        %v676 = vsel %vm675, %v668, %v672
        %v677 = vand.u32 2147483647, %v552
        %vm678 = vcmp.eq.f32.partialorder %v677, 8.507059e+37
        %v679 = vand.u32 %v552, 2147483648
        %v680 = vor.u32 1.1754944e-38, %v679
        %v681 = vsel %vm678, %v680, %v676
        %v682 = vmul.f32 1.0, %v681
        %v683 = vrcp.pop %v553
        %v684 = vmul.f32 %v553, %v683
        %v685 = vsub.f32 1.0, %v684
        %v686 = vmul.f32 %v683, %v685
        %v687 = vadd.f32 %v683, %v686
        %vm688 = vweird.f32 %v553
        %vm689 = vweird.f32 %v683
        %vm690 = vmor %vm688, %vm689
        %v691 = vsel %vm690, %v683, %v687
        %v692 = vand.u32 2147483647, %v553
        %vm693 = vcmp.eq.f32.partialorder %v692, 8.507059e+37
        %v694 = vand.u32 %v553, 2147483648
        %v695 = vor.u32 1.1754944e-38, %v694
        %v696 = vsel %vm693, %v695, %v691
        %v697 = vmul.f32 1.0, %v696
        %v698 = vrcp.pop %v554
        %v699 = vmul.f32 %v554, %v698
        %v700 = vsub.f32 1.0, %v699
        %v701 = vmul.f32 %v698, %v700
        %v702 = vadd.f32 %v698, %v701
        %vm703 = vweird.f32 %v554
        %vm704 = vweird.f32 %v698
        %vm705 = vmor %vm703, %vm704
        %v706 = vsel %vm705, %v698, %v702
        %v707 = vand.u32 2147483647, %v554
        %vm708 = vcmp.eq.f32.partialorder %v707, 8.507059e+37
        %v709 = vand.u32 %v554, 2147483648
        %v710 = vor.u32 1.1754944e-38, %v709
        %v711 = vsel %vm708, %v710, %v706
        %v712 = vmul.f32 1.0, %v711
        %v713 = vrcp.pop %v555
        %v714 = vmul.f32 %v555, %v713
        %v715 = vsub.f32 1.0, %v714
        %v716 = vmul.f32 %v713, %v715
        %v717 = vadd.f32 %v713, %v716
        %vm718 = vweird.f32 %v555
        %vm719 = vweird.f32 %v713
        %vm720 = vmor %vm718, %vm719
        %v721 = vsel %vm720, %v713, %v717
        %v722 = vand.u32 2147483647, %v555
        %vm723 = vcmp.eq.f32.partialorder %v722, 8.507059e+37
        %v724 = vand.u32 %v555, 2147483648
        %v725 = vor.u32 1.1754944e-38, %v724
        %v726 = vsel %vm723, %v725, %v721
        %v727 = vmul.f32 1.0, %v726
        %v728 = vrcp.pop %v556
        %v729 = vmul.f32 %v556, %v728
        %v730 = vsub.f32 1.0, %v729
        %v731 = vmul.f32 %v728, %v730
        %v732 = vadd.f32 %v728, %v731
        %vm733 = vweird.f32 %v556
        %vm734 = vweird.f32 %v728
        %vm735 = vmor %vm733, %vm734
        %v736 = vsel %vm735, %v728, %v732
        %v737 = vand.u32 2147483647, %v556
        %vm738 = vcmp.eq.f32.partialorder %v737, 8.507059e+37
        %v739 = vand.u32 %v556, 2147483648
        %v740 = vor.u32 1.1754944e-38, %v739
        %v741 = vsel %vm738, %v740, %v736
        %v742 = vmul.f32 1.0, %v741
        %v743 = vrcp.pop %v557
        %v744 = vmul.f32 %v557, %v743
        %v745 = vsub.f32 1.0, %v744
        %v746 = vmul.f32 %v743, %v745
        %v747 = vadd.f32 %v743, %v746
        %vm748 = vweird.f32 %v557
        %vm749 = vweird.f32 %v743
        %vm750 = vmor %vm748, %vm749
        %v751 = vsel %vm750, %v743, %v747
        %v752 = vand.u32 2147483647, %v557
        %vm753 = vcmp.eq.f32.partialorder %v752, 8.507059e+37
        %v754 = vand.u32 %v557, 2147483648
        %v755 = vor.u32 1.1754944e-38, %v754
        %v756 = vsel %vm753, %v755, %v751
        %v757 = vmul.f32 1.0, %v756
        %v758 = vrcp.pop %v558
        %v759 = vmul.f32 %v558, %v758
        %v760 = vsub.f32 1.0, %v759
        %v761 = vmul.f32 %v758, %v760
        %v762 = vadd.f32 %v758, %v761
        %vm763 = vweird.f32 %v558
        %vm764 = vweird.f32 %v758
        %vm765 = vmor %vm763, %vm764
        %v766 = vsel %vm765, %v758, %v762
        %v767 = vand.u32 2147483647, %v558
        %vm768 = vcmp.eq.f32.partialorder %v767, 8.507059e+37
        %v769 = vand.u32 %v558, 2147483648
        %v770 = vor.u32 1.1754944e-38, %v769
        %v771 = vsel %vm768, %v770, %v766
        %v772 = vmul.f32 1.0, %v771
        %v773 = vrcp.pop %v559
        %v774 = vmul.f32 %v559, %v773
        %v775 = vsub.f32 1.0, %v774
        %v776 = vmul.f32 %v773, %v775
        %v777 = vadd.f32 %v773, %v776
        %vm778 = vweird.f32 %v559
        %vm779 = vweird.f32 %v773
        %vm780 = vmor %vm778, %vm779
        %v781 = vsel %vm780, %v773, %v777
        %v782 = vand.u32 2147483647, %v559
        %vm783 = vcmp.eq.f32.partialorder %v782, 8.507059e+37
        %v784 = vand.u32 %v559, 2147483648
        %v785 = vor.u32 1.1754944e-38, %v784
        %v786 = vsel %vm783, %v785, %v781
        %v787 = vmul.f32 1.0, %v786
        %v788 = vrcp.pop %v560
        %v789 = vmul.f32 %v560, %v788
        %v790 = vsub.f32 1.0, %v789
        %v791 = vmul.f32 %v788, %v790
        %v792 = vadd.f32 %v788, %v791
        %vm793 = vweird.f32 %v560
        %vm794 = vweird.f32 %v788
        %vm795 = vmor %vm793, %vm794
        %v796 = vsel %vm795, %v788, %v792
        %v797 = vand.u32 2147483647, %v560
        %vm798 = vcmp.eq.f32.partialorder %v797, 8.507059e+37
        %v799 = vand.u32 %v560, 2147483648
        %v800 = vor.u32 1.1754944e-38, %v799
        %v801 = vsel %vm798, %v800, %v796
        %v802 = vmul.f32 1.0, %v801
        %v803 = vrcp.pop %v561
        %v804 = vmul.f32 %v561, %v803
        %v805 = vsub.f32 1.0, %v804
        %v806 = vmul.f32 %v803, %v805
        %v807 = vadd.f32 %v803, %v806
        %vm808 = vweird.f32 %v561
        %vm809 = vweird.f32 %v803
        %vm810 = vmor %vm808, %vm809
        %v811 = vsel %vm810, %v803, %v807
        %v812 = vand.u32 2147483647, %v561
        %vm813 = vcmp.eq.f32.partialorder %v812, 8.507059e+37
        %v814 = vand.u32 %v561, 2147483648
        %v815 = vor.u32 1.1754944e-38, %v814
        %v816 = vsel %vm813, %v815, %v811
        %v817 = vmul.f32 1.0, %v816
        %v818 = vrcp.pop %v562
        %v819 = vmul.f32 %v562, %v818
        %v820 = vsub.f32 1.0, %v819
        %v821 = vmul.f32 %v818, %v820
        %v822 = vadd.f32 %v818, %v821
        %vm823 = vweird.f32 %v562
        %vm824 = vweird.f32 %v818
        %vm825 = vmor %vm823, %vm824
        %v826 = vsel %vm825, %v818, %v822
        %v827 = vand.u32 2147483647, %v562
        %vm828 = vcmp.eq.f32.partialorder %v827, 8.507059e+37
        %v829 = vand.u32 %v562, 2147483648
        %v830 = vor.u32 1.1754944e-38, %v829
        %v831 = vsel %vm828, %v830, %v826
        %v832 = vmul.f32 1.0, %v831
        %v833 = vrcp.pop %v563
        %v834 = vmul.f32 %v563, %v833
        %v835 = vsub.f32 1.0, %v834
        %v836 = vmul.f32 %v833, %v835
        %v837 = vadd.f32 %v833, %v836
        %vm838 = vweird.f32 %v563
        %vm839 = vweird.f32 %v833
        %vm840 = vmor %vm838, %vm839
        %v841 = vsel %vm840, %v833, %v837
        %v842 = vand.u32 2147483647, %v563
        %vm843 = vcmp.eq.f32.partialorder %v842, 8.507059e+37
        %v844 = vand.u32 %v563, 2147483648
        %v845 = vor.u32 1.1754944e-38, %v844
        %v846 = vsel %vm843, %v845, %v841
        %v847 = vmul.f32 1.0, %v846
        %v848 = vrcp.pop %v564
        %v849 = vmul.f32 %v564, %v848
        %v850 = vsub.f32 1.0, %v849
        %v851 = vmul.f32 %v848, %v850
        %v852 = vadd.f32 %v848, %v851
        %vm853 = vweird.f32 %v564
        %vm854 = vweird.f32 %v848
        %vm855 = vmor %vm853, %vm854
        %v856 = vsel %vm855, %v848, %v852
        %v857 = vand.u32 2147483647, %v564
        %vm858 = vcmp.eq.f32.partialorder %v857, 8.507059e+37
        %v859 = vand.u32 %v564, 2147483648
        %v860 = vor.u32 1.1754944e-38, %v859
        %v861 = vsel %vm858, %v860, %v856
        %v862 = vmul.f32 1.0, %v861
        %v863 = vrcp.pop %v565
        %v864 = vmul.f32 %v565, %v863
        %v865 = vsub.f32 1.0, %v864
        %v866 = vmul.f32 %v863, %v865
        %v867 = vadd.f32 %v863, %v866
        %vm868 = vweird.f32 %v565
        %vm869 = vweird.f32 %v863
        %vm870 = vmor %vm868, %vm869
        %v871 = vsel %vm870, %v863, %v867
        %v872 = vand.u32 2147483647, %v565
        %vm873 = vcmp.eq.f32.partialorder %v872, 8.507059e+37
        %v874 = vand.u32 %v565, 2147483648
        %v875 = vor.u32 1.1754944e-38, %v874
        %v876 = vsel %vm873, %v875, %v871
        %v877 = vmul.f32 1.0, %v876
        %v878 = vrcp.pop %v566
        %v879 = vmul.f32 %v566, %v878
        %v880 = vsub.f32 1.0, %v879
        %v881 = vmul.f32 %v878, %v880
        %v882 = vadd.f32 %v878, %v881
        %vm883 = vweird.f32 %v566
        %vm884 = vweird.f32 %v878
        %vm885 = vmor %vm883, %vm884
        %v886 = vsel %vm885, %v878, %v882
        %v887 = vand.u32 2147483647, %v566
        %vm888 = vcmp.eq.f32.partialorder %v887, 8.507059e+37
        %v889 = vand.u32 %v566, 2147483648
        %v890 = vor.u32 1.1754944e-38, %v889
        %v891 = vsel %vm888, %v890, %v886
        %v892 = vmul.f32 1.0, %v891
        %v893 = vrcp.pop %v567
        %v894 = vmul.f32 %v567, %v893
        %v895 = vsub.f32 1.0, %v894
        %v896 = vmul.f32 %v893, %v895
        %v897 = vadd.f32 %v893, %v896
        %vm898 = vweird.f32 %v567
        %vm899 = vweird.f32 %v893
        %vm900 = vmor %vm898, %vm899
        %v901 = vsel %vm900, %v893, %v897
        %v902 = vand.u32 2147483647, %v567
        %vm903 = vcmp.eq.f32.partialorder %v902, 8.507059e+37
        %v904 = vand.u32 %v567, 2147483648
        %v905 = vor.u32 1.1754944e-38, %v904
        %v906 = vsel %vm903, %v905, %v901
        %v907 = vmul.f32 1.0, %v906
        %v908 = vrcp.pop %v568
        %v909 = vmul.f32 %v568, %v908
        %v910 = vsub.f32 1.0, %v909
        %v911 = vmul.f32 %v908, %v910
        %v912 = vadd.f32 %v908, %v911
        %vm913 = vweird.f32 %v568
        %vm914 = vweird.f32 %v908
        %vm915 = vmor %vm913, %vm914
        %v916 = vsel %vm915, %v908, %v912
        %v917 = vand.u32 2147483647, %v568
        %vm918 = vcmp.eq.f32.partialorder %v917, 8.507059e+37
        %v919 = vand.u32 %v568, 2147483648
        %v920 = vor.u32 1.1754944e-38, %v919
        %v921 = vsel %vm918, %v920, %v916
        %v922 = vmul.f32 1.0, %v921
        %v923 = vrcp.pop %v569
        %v924 = vmul.f32 %v569, %v923
        %v925 = vsub.f32 1.0, %v924
        %v926 = vmul.f32 %v923, %v925
        %v927 = vadd.f32 %v923, %v926
        %vm928 = vweird.f32 %v569
        %vm929 = vweird.f32 %v923
        %vm930 = vmor %vm928, %vm929
        %v931 = vsel %vm930, %v923, %v927
        %v932 = vand.u32 2147483647, %v569
        %vm933 = vcmp.eq.f32.partialorder %v932, 8.507059e+37
        %v934 = vand.u32 %v569, 2147483648
        %v935 = vor.u32 1.1754944e-38, %v934
        %v936 = vsel %vm933, %v935, %v931
        %v937 = vmul.f32 1.0, %v936
        %v938 = vrcp.pop %v570
        %v939 = vmul.f32 %v570, %v938
        %v940 = vsub.f32 1.0, %v939
        %v941 = vmul.f32 %v938, %v940
        %v942 = vadd.f32 %v938, %v941
        %vm943 = vweird.f32 %v570
        %vm944 = vweird.f32 %v938
        %vm945 = vmor %vm943, %vm944
        %v946 = vsel %vm945, %v938, %v942
        %v947 = vand.u32 2147483647, %v570
        %vm948 = vcmp.eq.f32.partialorder %v947, 8.507059e+37
        %v949 = vand.u32 %v570, 2147483648
        %v950 = vor.u32 1.1754944e-38, %v949
        %v951 = vsel %vm948, %v950, %v946
        %v952 = vmul.f32 1.0, %v951
        %v953 = vrcp.pop %v571
        %v954 = vmul.f32 %v571, %v953
        %v955 = vsub.f32 1.0, %v954
        %v956 = vmul.f32 %v953, %v955
        %v957 = vadd.f32 %v953, %v956
        %vm958 = vweird.f32 %v571
        %vm959 = vweird.f32 %v953
        %vm960 = vmor %vm958, %vm959
        %v961 = vsel %vm960, %v953, %v957
        %v962 = vand.u32 2147483647, %v571
        %vm963 = vcmp.eq.f32.partialorder %v962, 8.507059e+37
        %v964 = vand.u32 %v571, 2147483648
        %v965 = vor.u32 1.1754944e-38, %v964
        %v966 = vsel %vm963, %v965, %v961
        %v967 = vmul.f32 1.0, %v966
        %v968 = vrcp.pop %v572
        %v969 = vmul.f32 %v572, %v968
        %v970 = vsub.f32 1.0, %v969
        %v971 = vmul.f32 %v968, %v970
        %v972 = vadd.f32 %v968, %v971
        %vm973 = vweird.f32 %v572
        %vm974 = vweird.f32 %v968
        %vm975 = vmor %vm973, %vm974
        %v976 = vsel %vm975, %v968, %v972
        %v977 = vand.u32 2147483647, %v572
        %vm978 = vcmp.eq.f32.partialorder %v977, 8.507059e+37
        %v979 = vand.u32 %v572, 2147483648
        %v980 = vor.u32 1.1754944e-38, %v979
        %v981 = vsel %vm978, %v980, %v976
        %v982 = vmul.f32 1.0, %v981
        %v983 = vrcp.pop %v573
        %v984 = vmul.f32 %v573, %v983
        %v985 = vsub.f32 1.0, %v984
        %v986 = vmul.f32 %v983, %v985
        %v987 = vadd.f32 %v983, %v986
        %vm988 = vweird.f32 %v573
        %vm989 = vweird.f32 %v983
        %vm990 = vmor %vm988, %vm989
        %v991 = vsel %vm990, %v983, %v987
        %v992 = vand.u32 2147483647, %v573
        %vm993 = vcmp.eq.f32.partialorder %v992, 8.507059e+37
        %v994 = vand.u32 %v573, 2147483648
        %v995 = vor.u32 1.1754944e-38, %v994
        %v996 = vsel %vm993, %v995, %v991
        %v997 = vmul.f32 1.0, %v996
        %v998 = vrcp.pop %v574
        %v999 = vmul.f32 %v574, %v998
        %v1000 = vsub.f32 1.0, %v999
        %v1001 = vmul.f32 %v998, %v1000
        %v1002 = vadd.f32 %v998, %v1001
        %vm1003 = vweird.f32 %v574
        %vm1004 = vweird.f32 %v998
        %vm1005 = vmor %vm1003, %vm1004
        %v1006 = vsel %vm1005, %v998, %v1002
        %v1007 = vand.u32 2147483647, %v574
        %vm1008 = vcmp.eq.f32.partialorder %v1007, 8.507059e+37
        %v1009 = vand.u32 %v574, 2147483648
        %v1010 = vor.u32 1.1754944e-38, %v1009
        %v1011 = vsel %vm1008, %v1010, %v1006
        %v1012 = vmul.f32 1.0, %v1011
        %v1013 = vrcp.pop %v575
        %v1014 = vmul.f32 %v575, %v1013
        %v1015 = vsub.f32 1.0, %v1014
        %v1016 = vmul.f32 %v1013, %v1015
        %v1017 = vadd.f32 %v1013, %v1016
        %vm1018 = vweird.f32 %v575
        %vm1019 = vweird.f32 %v1013
        %vm1020 = vmor %vm1018, %vm1019
        %v1021 = vsel %vm1020, %v1013, %v1017
        %v1022 = vand.u32 2147483647, %v575
        %vm1023 = vcmp.eq.f32.partialorder %v1022, 8.507059e+37
        %v1024 = vand.u32 %v575, 2147483648
        %v1025 = vor.u32 1.1754944e-38, %v1024
        %v1026 = vsel %vm1023, %v1025, %v1021
        %v1027 = vmul.f32 1.0, %v1026
        %v1028 = vrcp.pop %v576
        %v1029 = vmul.f32 %v576, %v1028
        %v1030 = vsub.f32 1.0, %v1029
        %v1031 = vmul.f32 %v1028, %v1030
        %v1032 = vadd.f32 %v1028, %v1031
        %vm1033 = vweird.f32 %v576
        %vm1034 = vweird.f32 %v1028
        %vm1035 = vmor %vm1033, %vm1034
        %v1036 = vsel %vm1035, %v1028, %v1032
        %v1037 = vand.u32 2147483647, %v576
        %vm1038 = vcmp.eq.f32.partialorder %v1037, 8.507059e+37
        %v1039 = vand.u32 %v576, 2147483648
        %v1040 = vor.u32 1.1754944e-38, %v1039
        %v1041 = vsel %vm1038, %v1040, %v1036
        %v1042 = vmul.f32 1.0, %v1041
        %v1043 = vrcp.pop %v577
        %v1044 = vmul.f32 %v577, %v1043
        %v1045 = vsub.f32 1.0, %v1044
        %v1046 = vmul.f32 %v1043, %v1045
        %v1047 = vadd.f32 %v1043, %v1046
        %vm1048 = vweird.f32 %v577
        %vm1049 = vweird.f32 %v1043
        %vm1050 = vmor %vm1048, %vm1049
        %v1051 = vsel %vm1050, %v1043, %v1047
        %v1052 = vand.u32 2147483647, %v577
        %vm1053 = vcmp.eq.f32.partialorder %v1052, 8.507059e+37
        %v1054 = vand.u32 %v577, 2147483648
        %v1055 = vor.u32 1.1754944e-38, %v1054
        %v1056 = vsel %vm1053, %v1055, %v1051
        %v1057 = vmul.f32 1.0, %v1056
        %v1058 = vmul.f32 %v355, %v592
        %v1059 = vmul.f32 %v358, %v607
        %v1060 = vmul.f32 %v361, %v622
        %v1061 = vmul.f32 %v364, %v637
        %v1062 = vmul.f32 %v367, %v652
        %v1063 = vmul.f32 %v370, %v667
        %v1064 = vmul.f32 %v373, %v682
        %v1065 = vmul.f32 %v376, %v697
        %v1066 = vmul.f32 %v379, %v712
        %v1067 = vmul.f32 %v382, %v727
        %v1068 = vmul.f32 %v385, %v742
        %v1069 = vmul.f32 %v388, %v757
        %v1070 = vmul.f32 %v391, %v772
        %v1071 = vmul.f32 %v394, %v787
        %v1072 = vmul.f32 %v397, %v802
        %v1073 = vmul.f32 %v400, %v817
        %v1074 = vmul.f32 %v403, %v832
        %v1075 = vmul.f32 %v406, %v847
        %v1076 = vmul.f32 %v409, %v862
        %v1077 = vmul.f32 %v412, %v877
        %v1078 = vmul.f32 %v415, %v892
        %v1079 = vmul.f32 %v418, %v907
        %v1080 = vmul.f32 %v421, %v922
        %v1081 = vmul.f32 %v424, %v937
        %v1082 = vmul.f32 %v427, %v952
        %v1083 = vmul.f32 %v430, %v967
        %v1084 = vmul.f32 %v433, %v982
        %v1085 = vmul.f32 %v436, %v997
        %v1086 = vmul.f32 %v439, %v1012
        %v1087 = vmul.f32 %v442, %v1027
        %v1088 = vmul.f32 %v445, %v1042
        %v1089 = vmul.f32 %v448, %v1057
        %vm1090 = vcmask 261120
        %1091 = vst.msk [vmem:[%s190] sm:$0xff] %vm1090, %v1058
        %1092 = vst.msk [vmem:[%s190 + $0x8] sm:$0xff] %vm1090, %v1059
        %1093 = vst.msk [vmem:[%s190 + $0x10] sm:$0xff] %vm1090, %v1060
        %1094 = vst.msk [vmem:[%s190 + $0x18] sm:$0xff] %vm1090, %v1061
        %1095 = vst.msk [vmem:[%s190 + $0x20] sm:$0xff] %vm1090, %v1062
        %1096 = vst.msk [vmem:[%s190 + $0x28] sm:$0xff] %vm1090, %v1063
        %1097 = vst.msk [vmem:[%s190 + $0x30] sm:$0xff] %vm1090, %v1064
        %1098 = vst.msk [vmem:[%s190 + $0x38] sm:$0xff] %vm1090, %v1065
        %1099 = vst.msk [vmem:[%s190 + $0x40] sm:$0xff] %vm1090, %v1066
        %1100 = vst.msk [vmem:[%s190 + $0x48] sm:$0xff] %vm1090, %v1067
        %1101 = vst.msk [vmem:[%s190 + $0x50] sm:$0xff] %vm1090, %v1068
        %1102 = vst.msk [vmem:[%s190 + $0x58] sm:$0xff] %vm1090, %v1069
        %1103 = vst.msk [vmem:[%s190 + $0x60] sm:$0xff] %vm1090, %v1070
        %1104 = vst.msk [vmem:[%s190 + $0x68] sm:$0xff] %vm1090, %v1071
        %1105 = vst.msk [vmem:[%s190 + $0x70] sm:$0xff] %vm1090, %v1072
        %1106 = vst.msk [vmem:[%s190 + $0x78] sm:$0xff] %vm1090, %v1073
        %1107 = vst.msk [vmem:[%s190 + $0x80] sm:$0xff] %vm1090, %v1074
        %1108 = vst.msk [vmem:[%s190 + $0x88] sm:$0xff] %vm1090, %v1075
        %1109 = vst.msk [vmem:[%s190 + $0x90] sm:$0xff] %vm1090, %v1076
        %1110 = vst.msk [vmem:[%s190 + $0x98] sm:$0xff] %vm1090, %v1077
        %1111 = vst.msk [vmem:[%s190 + $0xa0] sm:$0xff] %vm1090, %v1078
        %1112 = vst.msk [vmem:[%s190 + $0xa8] sm:$0xff] %vm1090, %v1079
        %1113 = vst.msk [vmem:[%s190 + $0xb0] sm:$0xff] %vm1090, %v1080
        %1114 = vst.msk [vmem:[%s190 + $0xb8] sm:$0xff] %vm1090, %v1081
        %1115 = vst.msk [vmem:[%s190 + $0xc0] sm:$0xff] %vm1090, %v1082
        %1116 = vst.msk [vmem:[%s190 + $0xc8] sm:$0xff] %vm1090, %v1083
        %1117 = vst.msk [vmem:[%s190 + $0xd0] sm:$0xff] %vm1090, %v1084
        %1118 = vst.msk [vmem:[%s190 + $0xd8] sm:$0xff] %vm1090, %v1085
        %1119 = vst.msk [vmem:[%s190 + $0xe0] sm:$0xff] %vm1090, %v1086
        %1120 = vst.msk [vmem:[%s190 + $0xe8] sm:$0xff] %vm1090, %v1087
        %1121 = vst.msk [vmem:[%s190 + $0xf0] sm:$0xff] %vm1090, %v1088
        %1122 = vst.msk [vmem:[%s190 + $0xf8] sm:$0xff] %vm1090, %v1089
        %s1123 = sand.u32 %s109, 1
        %s1124 = scalar_lea.sflag [#allocation3], %s1123
        %s1125 = sand.u32 %s109, 1
        %s1126 = smul.addr %s1125, 256
        %s1127 = scalar_lea.vmem [#allocation2], %s1126
        // Predicated region
        $region33: #{tpu_custom_call.1} parent=31 // pred_check
          %p1128 = pneg %p119
        $region34: #{tpu_custom_call.1} parent=31 // pred_check_branch
          %1130 = sbr.rel (%p1128) target = $region36
        $region35: #{tpu_custom_call.1} parent=31 // pred_region
          %s1131 = smul.u32 16, %s22
          %1133 = vsyncadd %s1124, 0
          %s1134 = smul.addr %s1131, 2
          %s1135 = smul.addr %s21, 32
          %s1136 = sadd.s32 %s1134, %s1135
          %s1137 = smul.addr %s1136, 8
          %s1138 = scalar_lea.hbm %s3, %s1137
          %s1139 = sshll.u32 %s1127, 4
          %s1140 = int_to_ptr.vmem [resolvable:$true] %s1139
          %s1141 = sshll.u32 %s1138, 4
          %s1142 = int_to_ptr.hbm [resolvable:$true] %s1141
          %1147 = dma.vmem_to_hbm [thread:$0]  %s1140, 4096, %s1142, %s1124, 128, 128, 8
        $region36: #{tpu_custom_call.1} parent=31 // pred_fallthru
          _
      $region32: #{tpu_custom_call.1} parent=5 // pred_fallthru
        _
      %p1148 = scmp.le.s32.totalorder 2, %s12
      // Predicated region
      $region37: #{tpu_custom_call.1} parent=5 // pred_check
        %p1149 = pneg %p1148
      $region38: #{tpu_custom_call.1} parent=5 // pred_check_branch
        %1151 = sbr.rel (%p1149) target = $region40
      $region39: #{tpu_custom_call.1} parent=5 // pred_region
        %s1152 = ssub.s32 %s12, 2
        // Predicated region
        $region41: #{tpu_custom_call.1} parent=39 // pred_check
          %p1153 = pneg %p125
        $region42: #{tpu_custom_call.1} parent=39 // pred_check_branch
          %1155 = sbr.rel (%p1153) target = $region44
        $region43: #{tpu_custom_call.1} parent=39 // pred_region
          %s1156 = sand.u32 %s110, 1
          %s1157 = scalar_lea.sflag [#allocation3], %s1156
          %s1158 = sand.u32 %s110, 1
          %s1159 = smul.addr %s1158, 256
          %s1160 = scalar_lea.vmem [#allocation2], %s1159
          %1162 = dma.done %s1157, 4096
        $region44: #{tpu_custom_call.1} parent=39 // pred_fallthru
          _
      $region40: #{tpu_custom_call.1} parent=5 // pred_fallthru
        _
    $region6: #{tpu_custom_call.1} parent=1 // loop_footer
      %s16 = sadd.s32 1, %s12
    $region7: #{tpu_custom_call.1} parent=1 // loop_footer_branch
      %11 = sbr.rel target = $region3
    $region8: #{tpu_custom_call.1} parent=1 // loop_exit
      _
    %1163 = vsyncpa [#allocation3], 1
    %s1164 = scalar_lea.sflag [#allocation3], 1
    %1165 = vsyncpa %s1164, 1

</llo_original>
